<compile_context>
chip_gen: v5e
topology: v5e:2x2
jax: 0.10.0
libtpu: 0.0.40
codegen_flags: <defaults>
</compile_context>

<pallas_src>
import numpy as np
import jax
import jax.numpy as jnp
from jax.experimental import pallas as pl
from jax.experimental.pallas import tpu as pltpu

K_PAD = 128  # padded contraction dim (W*Cin = 48 -> 128, full-lane vregs)


def make_fused_kernel(B, H, W, cout):
    """Fused conv_stem (as 3 batch-folded MXU matmuls) + avg-pool + linear."""
    inv_hw = 1.0 / float(H * W)
    n = W * cout

    def kernel(xs_ref, wband_ref, wl_ref, b_ref, o_ref):
        # xs_ref:    (3, B*H, K_PAD)   bf16 pre-shifted conv row windows
        # wband_ref: (3, K_PAD, W*Cout) bf16 banded conv weights (one per kh)
        # wl_ref:    (1, W*Cout)        f32 last_linear weight tiled across W
        # b_ref:     (1, 1)             f32 last_linear bias
        # o_ref:     (B, 1)             logits
        #
        # 3x3 conv == 3 bf16 MXU matmuls with f32 accumulation; batch is
        # folded into M (= B*H).  The width halo is encoded in the weight's
        # band structure, the height halo in the wrapper-built row windows.
        c = jnp.dot(xs_ref[0], wband_ref[0], preferred_element_type=jnp.float32)
        c = c + jnp.dot(xs_ref[1], wband_ref[1],
                        preferred_element_type=jnp.float32)
        c = c + jnp.dot(xs_ref[2], wband_ref[2],
                        preferred_element_type=jnp.float32)
        # `c` IS the conv_stem feature map, (B*H, W*Cout) f32, VMEM-resident.

        # AdaptiveAvgPool2d(1) + Linear(nc, 1):
        #   y[b] = (1/HW) * sum_{h,w,co} feat[b,h,w,co] * wl[co] + bias
        # Reduce over H first (XLU), then one (B, W*Cout) VPU multiply+reduce.
        pooled = jnp.sum(c.reshape(B, H, n), axis=1)            # (B, W*Cout)
        y = jnp.sum(pooled * wl_ref[...], axis=1, keepdims=True)
        y = y * inv_hw + b_ref[...]                             # (B, 1)
        o_ref[...] = y.astype(o_ref.dtype)

    return kernel


def prepare_params(w_stem_oihw, w_lin, b_lin, W):
    """One-time weight reshuffle (runs once; NOT on the per-call path).

    Builds the banded conv weight
        wband[kh, u*Cin+ci, w*Cout+co] = w[kh, kw=u-w+1, ci, co]  (0<=kw<3)
    which absorbs the left/right zero halo of "padding=1", padded to K=128
    and cast to bf16, plus the W-tiled linear weight and 2-D bias.
    """
    cout, cin, _, _ = w_stem_oihw.shape
    w_hwio = jnp.transpose(w_stem_oihw, (2, 3, 1, 0)).astype(jnp.float32)
    sel = np.zeros((3, W, W), np.float32)                    # static selector
    for kw in range(3):
        for w in range(W):
            u = w + kw - 1
            if 0 <= u < W:
                sel[kw, u, w] = 1.0
    wband = jnp.einsum("kuw,hkio->huiwo", sel, w_hwio)
    wband = wband.reshape(3, W * cin, W * cout)
    wband = jnp.pad(wband, ((0, 0), (0, K_PAD - W * cin), (0, 0)))
    wband = wband.astype(jnp.bfloat16)                       # (3, 128, W*Cout)

    wl_tiled = jnp.tile(w_lin.astype(jnp.float32).reshape(-1), W)
    wl_tiled = wl_tiled.reshape(1, W * cout)                 # (1, W*Cout)
    b2d = b_lin.astype(jnp.float32).reshape(1, 1)            # (1, 1)
    return wband, wl_tiled, b2d


@jax.jit
def model_forward(x_nchw, wband, wl_tiled, b2d):
    """NCHW input (PyTorch convention) -> (B, num_classes=1) logits."""
    B, Cin, H, W = x_nchw.shape
    Cout = wband.shape[2] // W
    num_classes = 1

    # ---- input layout plumbing (jit'ed, cheap XLA) ----
    # NCHW -> (B, H, W*Cin) rows, channels innermost; pad rows by 1 (height
    # halo) and lanes to K_PAD; build the 3 vertically shifted row windows so
    # the kernel needs zero in-kernel padding / unaligned slicing.
    x_rows = jnp.transpose(x_nchw, (0, 2, 3, 1)).reshape(B, H, W * Cin)
    x_rows = jnp.pad(x_rows, ((0, 0), (1, 1), (0, K_PAD - W * Cin)))
    xs = jnp.stack([x_rows[:, kh:kh + H, :] for kh in range(3)], axis=0)
    xs = xs.reshape(3, B * H, K_PAD).astype(jnp.bfloat16)

    kernel = make_fused_kernel(B, H, W, Cout)

    # Single fused pallas_call, one grid step (whole problem fits in VMEM).
    # TODO(synk): for real image sizes, grid over batch/row tiles
    # ("parallel" for v7x's 2 TCs) and tile N = W*Cout to stay within VMEM.
    return pl.pallas_call(
        kernel,
        out_shape=jax.ShapeDtypeStruct((B, num_classes), x_nchw.dtype),
        grid=(1,),
        in_specs=[
            pl.BlockSpec((3, B * H, K_PAD), lambda i: (0, 0, 0)),
            pl.BlockSpec((3, K_PAD, W * Cout), lambda i: (0, 0, 0)),
            pl.BlockSpec((1, W * Cout), lambda i: (0, 0)),
            pl.BlockSpec((1, 1), lambda i: (0, 0)),
        ],
        out_specs=pl.BlockSpec((B, num_classes), lambda i: (0, 0)),
        compiler_params=pltpu.CompilerParams(
            dimension_semantics=("arbitrary",)),
    )(xs, wband, wl_tiled, b2d)


if __name__ == "__main__":
    B, Cin, H, W = 2, 3, 16, 16
    Cout = 32            # conv_stem output channels == stand-in num_features
    num_classes = 1

    key = jax.random.PRNGKey(0)
    k1, k2, k3, k4 = jax.random.split(key, 4)
    x_nchw = jax.random.normal(k1, (B, Cin, H, W), dtype=jnp.float32)
    w_stem = jax.random.normal(k2, (Cout, Cin, 3, 3), dtype=jnp.float32) * 0.1
    w_lin = jax.random.normal(k3, (num_classes, Cout), dtype=jnp.float32) * 0.1
    b_lin = jax.random.normal(k4, (num_classes,), dtype=jnp.float32)

    # One-time weight prep (hoisted off the per-call path).
    params = prepare_params(w_stem, w_lin, b_lin, W)

    y = model_forward(x_nchw, *params)
    y = jax.block_until_ready(y)
    assert y.shape == (B, num_classes)

    # Pure-JAX reference (same semantics as the PyTorch forward)
    ref_feat = jax.lax.conv_general_dilated(
        x_nchw, w_stem, window_strides=(1, 1), padding="SAME",
        dimension_numbers=("NCHW", "OIHW", "NCHW"))
    ref_pool = jnp.mean(ref_feat, axis=(2, 3))            # AdaptiveAvgPool2d(1)
    ref_y = ref_pool @ w_lin.T + b_lin                    # last_linear

    # bf16 MXU operands (f32 accumulation) -> slightly looser tolerance.
    assert jnp.allclose(y, ref_y, atol=2e-2, rtol=2e-2), (y, ref_y)
    print("KERNEL_OK")
</pallas_src>

<mosaic_0001>
module attributes {stable_mosaic.version = 11 : i64} {
  func.func @kernel(%arg0: i32, %arg1: memref<3x32x128xbf16, #tpu.memory_space<vmem>>, %arg2: memref<3x128x512xbf16, #tpu.memory_space<vmem>>, %arg3: memref<1x512xf32, #tpu.memory_space<vmem>>, %arg4: memref<1x1xf32, #tpu.memory_space<vmem>>, %arg5: memref<2x1xf32, #tpu.memory_space<vmem>>) attributes {dimension_semantics = [#tpu.dimension_semantics<arbitrary>], iteration_bounds = array<i64: 1>, scalar_prefetch = 0 : i64, scratch_operands = 0 : i64, tpu.core_type = #tpu.core_type<tc>, window_params = [{pipeline_mode = #tpu.pipeline_mode<synchronous>, transform_indices = @transform_0, window_bounds = array<i64: 3, 32, 128>}, {pipeline_mode = #tpu.pipeline_mode<synchronous>, transform_indices = @transform_1, window_bounds = array<i64: 3, 128, 512>}, {pipeline_mode = #tpu.pipeline_mode<synchronous>, transform_indices = @transform_2, window_bounds = array<i64: 1, 512>}, {pipeline_mode = #tpu.pipeline_mode<synchronous>, transform_indices = @transform_3, window_bounds = array<i64: 1, 1>}, {pipeline_mode = #tpu.pipeline_mode<synchronous>, transform_indices = @transform_4, window_bounds = array<i64: 2, 1>}]} {
    %c0 = arith.constant 0 : index
    %c0_0 = arith.constant 0 : index
    %c0_1 = arith.constant 0 : index
    %0 = vector.load %arg1[%c0, %c0_0, %c0_1] : memref<3x32x128xbf16, #tpu.memory_space<vmem>>, vector<1x32x128xbf16>
    %1 = vector.shape_cast %0 : vector<1x32x128xbf16> to vector<32x128xbf16>
    %c0_2 = arith.constant 0 : index
    %c0_3 = arith.constant 0 : index
    %c0_4 = arith.constant 0 : index
    %2 = vector.load %arg2[%c0_2, %c0_3, %c0_4] : memref<3x128x512xbf16, #tpu.memory_space<vmem>>, vector<1x128x512xbf16>
    %3 = vector.shape_cast %2 : vector<1x128x512xbf16> to vector<128x512xbf16>
    %cst = arith.constant dense<0.000000e+00> : vector<32x512xf32>
    %4 = tpu.matmul %1, %3, %cst {dimension_numbers = #tpu.dot_dimension_numbers<[1], [0], [0], [1], [0, 0, 1, 1], [], []>} : vector<32x128xbf16>, vector<128x512xbf16>, vector<32x512xf32> -> vector<32x512xf32>
    %c1 = arith.constant 1 : index
    %c0_5 = arith.constant 0 : index
    %c0_6 = arith.constant 0 : index
    %5 = vector.load %arg1[%c1, %c0_5, %c0_6] : memref<3x32x128xbf16, #tpu.memory_space<vmem>>, vector<1x32x128xbf16>
    %6 = vector.shape_cast %5 : vector<1x32x128xbf16> to vector<32x128xbf16>
    %c1_7 = arith.constant 1 : index
    %c0_8 = arith.constant 0 : index
    %c0_9 = arith.constant 0 : index
    %7 = vector.load %arg2[%c1_7, %c0_8, %c0_9] : memref<3x128x512xbf16, #tpu.memory_space<vmem>>, vector<1x128x512xbf16>
    %8 = vector.shape_cast %7 : vector<1x128x512xbf16> to vector<128x512xbf16>
    %cst_10 = arith.constant dense<0.000000e+00> : vector<32x512xf32>
    %9 = tpu.matmul %6, %8, %cst_10 {dimension_numbers = #tpu.dot_dimension_numbers<[1], [0], [0], [1], [0, 0, 1, 1], [], []>} : vector<32x128xbf16>, vector<128x512xbf16>, vector<32x512xf32> -> vector<32x512xf32>
    %10 = arith.addf %4, %9 : vector<32x512xf32>
    %c2 = arith.constant 2 : index
    %c0_11 = arith.constant 0 : index
    %c0_12 = arith.constant 0 : index
    %11 = vector.load %arg1[%c2, %c0_11, %c0_12] : memref<3x32x128xbf16, #tpu.memory_space<vmem>>, vector<1x32x128xbf16>
    %12 = vector.shape_cast %11 : vector<1x32x128xbf16> to vector<32x128xbf16>
    %c2_13 = arith.constant 2 : index
    %c0_14 = arith.constant 0 : index
    %c0_15 = arith.constant 0 : index
    %13 = vector.load %arg2[%c2_13, %c0_14, %c0_15] : memref<3x128x512xbf16, #tpu.memory_space<vmem>>, vector<1x128x512xbf16>
    %14 = vector.shape_cast %13 : vector<1x128x512xbf16> to vector<128x512xbf16>
    %cst_16 = arith.constant dense<0.000000e+00> : vector<32x512xf32>
    %15 = tpu.matmul %12, %14, %cst_16 {dimension_numbers = #tpu.dot_dimension_numbers<[1], [0], [0], [1], [0, 0, 1, 1], [], []>} : vector<32x128xbf16>, vector<128x512xbf16>, vector<32x512xf32> -> vector<32x512xf32>
    %16 = arith.addf %10, %15 : vector<32x512xf32>
    %17 = vector.shape_cast %16 : vector<32x512xf32> to vector<2x16x512xf32>
    %cst_17 = arith.constant dense<0.000000e+00> : vector<2x512xf32>
    %18 = vector.multi_reduction <add>, %17, %cst_17 [1] : vector<2x16x512xf32> to vector<2x512xf32>
    %c0_18 = arith.constant 0 : index
    %c0_19 = arith.constant 0 : index
    %19 = vector.load %arg3[%c0_18, %c0_19] : memref<1x512xf32, #tpu.memory_space<vmem>>, vector<1x512xf32>
    %20 = vector.broadcast %19 : vector<1x512xf32> to vector<2x512xf32>
    %21 = arith.mulf %18, %20 : vector<2x512xf32>
    %cst_20 = arith.constant dense<0.000000e+00> : vector<2xf32>
    %22 = vector.multi_reduction <add>, %21, %cst_20 [1] : vector<2x512xf32> to vector<2xf32>
    %23 = vector.shape_cast %22 : vector<2xf32> to vector<2x1xf32>
    %cst_21 = arith.constant 3.906250e-03 : f32
    %24 = vector.broadcast %cst_21 : f32 to vector<2x1xf32>
    %25 = arith.mulf %23, %24 : vector<2x1xf32>
    %c0_22 = arith.constant 0 : index
    %c0_23 = arith.constant 0 : index
    %26 = vector.load %arg4[%c0_22, %c0_23] : memref<1x1xf32, #tpu.memory_space<vmem>>, vector<1x1xf32>
    %27 = vector.broadcast %26 : vector<1x1xf32> to vector<2x1xf32>
    %28 = arith.addf %25, %27 : vector<2x1xf32>
    %c0_24 = arith.constant 0 : index
    %c0_25 = arith.constant 0 : index
    %29 = vector.load %arg5[%c0_24, %c0_25] : memref<2x1xf32, #tpu.memory_space<vmem>>, vector<2x1xf32>
    tpu.vector_store %arg5[%c0_24, %c0_25], %28 {strides = array<i32>} : memref<2x1xf32, #tpu.memory_space<vmem>>, vector<2x1xf32>,
    return
  }
  func.func @transform_0(%arg0: i32) -> (i32, i32, i32) {
    %c0_i32 = arith.constant 0 : i32
    %c0_i32_0 = arith.constant 0 : i32
    %c0_i32_1 = arith.constant 0 : i32
    %c0_i32_2 = arith.constant 0 : i32
    return %c0_i32, %c0_i32_0, %c0_i32_1 : i32, i32, i32
  }
  func.func @transform_1(%arg0: i32) -> (i32, i32, i32) {
    %c0_i32 = arith.constant 0 : i32
    %c0_i32_0 = arith.constant 0 : i32
    %c0_i32_1 = arith.constant 0 : i32
    %c0_i32_2 = arith.constant 0 : i32
    return %c0_i32, %c0_i32_0, %c0_i32_1 : i32, i32, i32
  }
  func.func @transform_2(%arg0: i32) -> (i32, i32) {
    %c0_i32 = arith.constant 0 : i32
    %c0_i32_0 = arith.constant 0 : i32
    %c0_i32_1 = arith.constant 0 : i32
    return %c0_i32, %c0_i32_0 : i32, i32
  }
  func.func @transform_3(%arg0: i32) -> (i32, i32) {
    %c0_i32 = arith.constant 0 : i32
    %c0_i32_0 = arith.constant 0 : i32
    %c0_i32_1 = arith.constant 0 : i32
    return %c0_i32, %c0_i32_0 : i32, i32
  }
  func.func @transform_4(%arg0: i32) -> (i32, i32) {
    %c0_i32 = arith.constant 0 : i32
    %c0_i32_0 = arith.constant 0 : i32
    %c0_i32_1 = arith.constant 0 : i32
    return %c0_i32, %c0_i32_0 : i32, i32
  }
}

</mosaic_0001>

<llo_original>
// kernel: model_forward.1
$region0: #{model_forward.1}
  #allocation0 [shape = 'u32[]', space=smem, size = 0x4, offset = 0x4, fixed_abs, tag = 'smem constant byte address 0x4 - core index']
  #allocation1 [shape = 'u32[72,128]{1,0:T(1,128)}', space=vmem, size = 0x9000, scoped, tag = 'internal scratch']
  #allocation2 [shape = 'f32[1,1]{1,0:T(1,128)S(1)}', space=vmem, size = 0x200, scoped, tag = 'scoped memory for model_forward.1']
  %s0 = inlined_call_operand.vmem [shape: bf16[3,32,128], index: 0, kind: input, shape index: {}]
  %s1 = inlined_call_operand.vmem [shape: bf16[3,128,512], index: 1, kind: input, shape index: {}]
  %s2 = inlined_call_operand.vmem [shape: f32[1,512], index: 2, kind: input, shape index: {}]
  %s3 = inlined_call_operand.<no memory space> [shape: f32[1,1], index: 3, kind: input, shape index: {}]
  %s4 = inlined_call_operand.vmem [shape: f32[2,1], index: 4, kind: output, shape index: {}]
  %s5 = sld [smem:[#allocation0]]
  $region26: #{model_forward.1} parent=0
    _
  %s7 = ssub.s32 1, %s5
  %s8 = scalar_select 0, %s7, %s5
  %v9 = vstv %s3
  %10 = vst [vmem:[#allocation2] sm:$0x1] %v9
  // Predicated region
  $region2: #{model_forward.1} parent=0 // pred_check
    _
  $region3: #{model_forward.1} parent=0 // pred_check_branch
    %12 = sbr.rel (0) target = $region5
  $region4: #{model_forward.1} parent=0 // pred_region
    _
  $region5: #{model_forward.1} parent=0 // pred_fallthru
    _
  // Predicated region
  $region6: #{model_forward.1} parent=0 // pred_check
    _
  $region7: #{model_forward.1} parent=0 // pred_check_branch
    %14 = sbr.rel (0) target = $region9
  $region8: #{model_forward.1} parent=0 // pred_region
    _
  $region9: #{model_forward.1} parent=0 // pred_fallthru
    _
  // Predicated region
  $region10: #{model_forward.1} parent=0 // pred_check
    _
  $region11: #{model_forward.1} parent=0 // pred_check_branch
    %16 = sbr.rel (0) target = $region13
  $region12: #{model_forward.1} parent=0 // pred_region
    _
  $region13: #{model_forward.1} parent=0 // pred_fallthru
    _
  // Predicated region
  $region14: #{model_forward.1} parent=0 // pred_check
    _
  $region15: #{model_forward.1} parent=0 // pred_check_branch
    %18 = sbr.rel (0) target = $region17
  $region16: #{model_forward.1} parent=0 // pred_region
    _
  $region17: #{model_forward.1} parent=0 // pred_fallthru
    _
  %v19 = vld [vmem:[%s0] sm:$0xf]
  %v20 = vld [vmem:[%s0 + $0x4] sm:$0xf]
  %v21 = vld [vmem:[%s0 + $0x8] sm:$0xf]
  %v22 = vld [vmem:[%s0 + $0xc] sm:$0xf]
  %v23 = vld [vmem:[%s1] sm:$0xff]
  %v24 = vld [vmem:[%s1 + $0x8] sm:$0xff]
  %v25 = vld [vmem:[%s1 + $0x10] sm:$0xff]
  %v26 = vld [vmem:[%s1 + $0x18] sm:$0xff]
  %v27 = vld [vmem:[%s1 + $0x20] sm:$0xff]
  %v28 = vld [vmem:[%s1 + $0x28] sm:$0xff]
  %v29 = vld [vmem:[%s1 + $0x30] sm:$0xff]
  %v30 = vld [vmem:[%s1 + $0x38] sm:$0xff]
  %v31 = vld [vmem:[%s1 + $0x40] sm:$0xff]
  %v32 = vld [vmem:[%s1 + $0x48] sm:$0xff]
  %v33 = vld [vmem:[%s1 + $0x50] sm:$0xff]
  %v34 = vld [vmem:[%s1 + $0x58] sm:$0xff]
  %v35 = vld [vmem:[%s1 + $0x60] sm:$0xff]
  %v36 = vld [vmem:[%s1 + $0x68] sm:$0xff]
  %v37 = vld [vmem:[%s1 + $0x70] sm:$0xff]
  %v38 = vld [vmem:[%s1 + $0x78] sm:$0xff]
  %v39 = vld [vmem:[%s1 + $0x80] sm:$0xff]
  %v40 = vld [vmem:[%s1 + $0x88] sm:$0xff]
  %v41 = vld [vmem:[%s1 + $0x90] sm:$0xff]
  %v42 = vld [vmem:[%s1 + $0x98] sm:$0xff]
  %v43 = vld [vmem:[%s1 + $0xa0] sm:$0xff]
  %v44 = vld [vmem:[%s1 + $0xa8] sm:$0xff]
  %v45 = vld [vmem:[%s1 + $0xb0] sm:$0xff]
  %v46 = vld [vmem:[%s1 + $0xb8] sm:$0xff]
  %v47 = vld [vmem:[%s1 + $0xc0] sm:$0xff]
  %v48 = vld [vmem:[%s1 + $0xc8] sm:$0xff]
  %v49 = vld [vmem:[%s1 + $0xd0] sm:$0xff]
  %v50 = vld [vmem:[%s1 + $0xd8] sm:$0xff]
  %v51 = vld [vmem:[%s1 + $0xe0] sm:$0xff]
  %v52 = vld [vmem:[%s1 + $0xe8] sm:$0xff]
  %v53 = vld [vmem:[%s1 + $0xf0] sm:$0xff]
  %v54 = vld [vmem:[%s1 + $0xf8] sm:$0xff]
  %s55 = scalar_lea.vmem %s0, 16
  %v56 = vld [vmem:[%s55] sm:$0xf]
  %v57 = vld [vmem:[%s55 + $0x4] sm:$0xf]
  %v58 = vld [vmem:[%s55 + $0x8] sm:$0xf]
  %v59 = vld [vmem:[%s55 + $0xc] sm:$0xf]
  %s60 = scalar_lea.vmem %s1, 256
  %v61 = vld [vmem:[%s60] sm:$0xff]
  %v62 = vld [vmem:[%s60 + $0x8] sm:$0xff]
  %v63 = vld [vmem:[%s60 + $0x10] sm:$0xff]
  %v64 = vld [vmem:[%s60 + $0x18] sm:$0xff]
  %v65 = vld [vmem:[%s60 + $0x20] sm:$0xff]
  %v66 = vld [vmem:[%s60 + $0x28] sm:$0xff]
  %v67 = vld [vmem:[%s60 + $0x30] sm:$0xff]
  %v68 = vld [vmem:[%s60 + $0x38] sm:$0xff]
  %v69 = vld [vmem:[%s60 + $0x40] sm:$0xff]
  %v70 = vld [vmem:[%s60 + $0x48] sm:$0xff]
  %v71 = vld [vmem:[%s60 + $0x50] sm:$0xff]
  %v72 = vld [vmem:[%s60 + $0x58] sm:$0xff]
  %v73 = vld [vmem:[%s60 + $0x60] sm:$0xff]
  %v74 = vld [vmem:[%s60 + $0x68] sm:$0xff]
  %v75 = vld [vmem:[%s60 + $0x70] sm:$0xff]
  %v76 = vld [vmem:[%s60 + $0x78] sm:$0xff]
  %v77 = vld [vmem:[%s60 + $0x80] sm:$0xff]
  %v78 = vld [vmem:[%s60 + $0x88] sm:$0xff]
  %v79 = vld [vmem:[%s60 + $0x90] sm:$0xff]
  %v80 = vld [vmem:[%s60 + $0x98] sm:$0xff]
  %v81 = vld [vmem:[%s60 + $0xa0] sm:$0xff]
  %v82 = vld [vmem:[%s60 + $0xa8] sm:$0xff]
  %v83 = vld [vmem:[%s60 + $0xb0] sm:$0xff]
  %v84 = vld [vmem:[%s60 + $0xb8] sm:$0xff]
  %v85 = vld [vmem:[%s60 + $0xc0] sm:$0xff]
  %v86 = vld [vmem:[%s60 + $0xc8] sm:$0xff]
  %v87 = vld [vmem:[%s60 + $0xd0] sm:$0xff]
  %v88 = vld [vmem:[%s60 + $0xd8] sm:$0xff]
  %v89 = vld [vmem:[%s60 + $0xe0] sm:$0xff]
  %v90 = vld [vmem:[%s60 + $0xe8] sm:$0xff]
  %v91 = vld [vmem:[%s60 + $0xf0] sm:$0xff]
  %v92 = vld [vmem:[%s60 + $0xf8] sm:$0xff]
  %v97 = vunpack.c.l.b16 %v56
  %v98 = vunpack.c.l.b16 %v57
  %v99 = vunpack.c.l.b16 %v58
  %v100 = vunpack.c.l.b16 %v59
  %v101 = vpack.c.b16 %v98, %v97
  %v102 = vpack.c.b16 %v100, %v99
  %v137 = vunpack.c.l.b16 %v61
  %v138 = vunpack.c.h.b16 %v61
  %v139 = vunpack.c.l.b16 %v62
  %v140 = vunpack.c.h.b16 %v62
  %v141 = vunpack.c.l.b16 %v63
  %v142 = vunpack.c.h.b16 %v63
  %v143 = vunpack.c.l.b16 %v64
  %v144 = vunpack.c.h.b16 %v64
  %v145 = vunpack.c.l.b16 %v65
  %v146 = vunpack.c.h.b16 %v65
  %v147 = vunpack.c.l.b16 %v66
  %v148 = vunpack.c.h.b16 %v66
  %v149 = vunpack.c.l.b16 %v67
  %v150 = vunpack.c.h.b16 %v67
  %v151 = vunpack.c.l.b16 %v68
  %v152 = vunpack.c.h.b16 %v68
  %v153 = vunpack.c.l.b16 %v69
  %v154 = vunpack.c.h.b16 %v69
  %v155 = vunpack.c.l.b16 %v70
  %v156 = vunpack.c.h.b16 %v70
  %v157 = vunpack.c.l.b16 %v71
  %v158 = vunpack.c.h.b16 %v71
  %v159 = vunpack.c.l.b16 %v72
  %v160 = vunpack.c.h.b16 %v72
  %v161 = vunpack.c.l.b16 %v73
  %v162 = vunpack.c.h.b16 %v73
  %v163 = vunpack.c.l.b16 %v74
  %v164 = vunpack.c.h.b16 %v74
  %v165 = vunpack.c.l.b16 %v75
  %v166 = vunpack.c.h.b16 %v75
  %v167 = vunpack.c.l.b16 %v76
  %v168 = vunpack.c.h.b16 %v76
  %v169 = vunpack.c.l.b16 %v77
  %v170 = vunpack.c.h.b16 %v77
  %v171 = vunpack.c.l.b16 %v78
  %v172 = vunpack.c.h.b16 %v78
  %v173 = vunpack.c.l.b16 %v79
  %v174 = vunpack.c.h.b16 %v79
  %v175 = vunpack.c.l.b16 %v80
  %v176 = vunpack.c.h.b16 %v80
  %v177 = vunpack.c.l.b16 %v81
  %v178 = vunpack.c.h.b16 %v81
  %v179 = vunpack.c.l.b16 %v82
  %v180 = vunpack.c.h.b16 %v82
  %v181 = vunpack.c.l.b16 %v83
  %v182 = vunpack.c.h.b16 %v83
  %v183 = vunpack.c.l.b16 %v84
  %v184 = vunpack.c.h.b16 %v84
  %v185 = vunpack.c.l.b16 %v85
  %v186 = vunpack.c.h.b16 %v85
  %v187 = vunpack.c.l.b16 %v86
  %v188 = vunpack.c.h.b16 %v86
  %v189 = vunpack.c.l.b16 %v87
  %v190 = vunpack.c.h.b16 %v87
  %v191 = vunpack.c.l.b16 %v88
  %v192 = vunpack.c.h.b16 %v88
  %v193 = vunpack.c.l.b16 %v89
  %v194 = vunpack.c.h.b16 %v89
  %v195 = vunpack.c.l.b16 %v90
  %v196 = vunpack.c.h.b16 %v90
  %v197 = vunpack.c.l.b16 %v91
  %v198 = vunpack.c.h.b16 %v91
  %v199 = vunpack.c.l.b16 %v92
  %v200 = vunpack.c.h.b16 %v92
  %v201 = vpack.c.b16 %v141, %v137
  %v202 = vpack.c.b16 %v142, %v138
  %v203 = vpack.c.b16 %v143, %v139
  %v204 = vpack.c.b16 %v144, %v140
  %v205 = vpack.c.b16 %v149, %v145
  %v206 = vpack.c.b16 %v150, %v146
  %v207 = vpack.c.b16 %v151, %v147
  %v208 = vpack.c.b16 %v152, %v148
  %v209 = vpack.c.b16 %v157, %v153
  %v210 = vpack.c.b16 %v158, %v154
  %v211 = vpack.c.b16 %v159, %v155
  %v212 = vpack.c.b16 %v160, %v156
  %v213 = vpack.c.b16 %v165, %v161
  %v214 = vpack.c.b16 %v166, %v162
  %v215 = vpack.c.b16 %v167, %v163
  %v216 = vpack.c.b16 %v168, %v164
  %v217 = vpack.c.b16 %v173, %v169
  %v218 = vpack.c.b16 %v174, %v170
  %v219 = vpack.c.b16 %v175, %v171
  %v220 = vpack.c.b16 %v176, %v172
  %v221 = vpack.c.b16 %v181, %v177
  %v222 = vpack.c.b16 %v182, %v178
  %v223 = vpack.c.b16 %v183, %v179
  %v224 = vpack.c.b16 %v184, %v180
  %v225 = vpack.c.b16 %v189, %v185
  %v226 = vpack.c.b16 %v190, %v186
  %v227 = vpack.c.b16 %v191, %v187
  %v228 = vpack.c.b16 %v192, %v188
  %v229 = vpack.c.b16 %v197, %v193
  %v230 = vpack.c.b16 %v198, %v194
  %v231 = vpack.c.b16 %v199, %v195
  %v232 = vpack.c.b16 %v200, %v196
  %265 = vmatpush.bf16.msra.mxu0 %v229
  %266 = vmatpush.bf16.msra.mxu0 %v225
  %267 = vmatpush.bf16.msra.mxu0 %v221
  %268 = vmatpush.bf16.msra.mxu0 %v217
  %269 = vmatpush.bf16.msra.mxu0 %v213
  %270 = vmatpush.bf16.msra.mxu0 %v209
  %271 = vmatpush.bf16.msra.mxu0 %v205
  %272 = vmatpush.bf16.msra.mxu0 %v201
  %273 = vmatmul.bf16.gmra.mxu0 %v101
  %v274 = vpop.f32.mrf.mxu0
  %v275 = vadd.f32 0.0, %v274
  %v276 = vpop.f32.mrf.mxu0
  %v277 = vadd.f32 0.0, %v276
  %278 = vmatmul.bf16.gmra.mxu0 %v102
  %v279 = vpop.f32.mrf.mxu0
  %v280 = vadd.f32 0.0, %v279
  %v281 = vpop.f32.mrf.mxu0
  %v282 = vadd.f32 0.0, %v281
  %283 = vdwg.mxu0
  %284 = vmatpush.bf16.msra.mxu0 %v230
  %285 = vmatpush.bf16.msra.mxu0 %v226
  %286 = vmatpush.bf16.msra.mxu0 %v222
  %287 = vmatpush.bf16.msra.mxu0 %v218
  %288 = vmatpush.bf16.msra.mxu0 %v214
  %289 = vmatpush.bf16.msra.mxu0 %v210
  %290 = vmatpush.bf16.msra.mxu0 %v206
  %291 = vmatpush.bf16.msra.mxu0 %v202
  %292 = vmatmul.bf16.gmra.mxu0 %v101
  %v293 = vpop.f32.mrf.mxu0
  %v294 = vadd.f32 0.0, %v293
  %v295 = vpop.f32.mrf.mxu0
  %v296 = vadd.f32 0.0, %v295
  %297 = vmatmul.bf16.gmra.mxu0 %v102
  %v298 = vpop.f32.mrf.mxu0
  %v299 = vadd.f32 0.0, %v298
  %v300 = vpop.f32.mrf.mxu0
  %v301 = vadd.f32 0.0, %v300
  %302 = vdwg.mxu0
  %303 = vmatpush.bf16.msra.mxu0 %v231
  %304 = vmatpush.bf16.msra.mxu0 %v227
  %305 = vmatpush.bf16.msra.mxu0 %v223
  %306 = vmatpush.bf16.msra.mxu0 %v219
  %307 = vmatpush.bf16.msra.mxu0 %v215
  %308 = vmatpush.bf16.msra.mxu0 %v211
  %309 = vmatpush.bf16.msra.mxu0 %v207
  %310 = vmatpush.bf16.msra.mxu0 %v203
  %311 = vmatmul.bf16.gmra.mxu0 %v101
  %v312 = vpop.f32.mrf.mxu0
  %v313 = vadd.f32 0.0, %v312
  %v314 = vpop.f32.mrf.mxu0
  %v315 = vadd.f32 0.0, %v314
  %316 = vmatmul.bf16.gmra.mxu0 %v102
  %v317 = vpop.f32.mrf.mxu0
  %v318 = vadd.f32 0.0, %v317
  %v319 = vpop.f32.mrf.mxu0
  %v320 = vadd.f32 0.0, %v319
  %321 = vdwg.mxu0
  %322 = vmatpush.bf16.msra.mxu0 %v232
  %323 = vmatpush.bf16.msra.mxu0 %v228
  %324 = vmatpush.bf16.msra.mxu0 %v224
  %325 = vmatpush.bf16.msra.mxu0 %v220
  %326 = vmatpush.bf16.msra.mxu0 %v216
  %327 = vmatpush.bf16.msra.mxu0 %v212
  %328 = vmatpush.bf16.msra.mxu0 %v208
  %329 = vmatpush.bf16.msra.mxu0 %v204
  %330 = vmatmul.bf16.gmra.mxu0 %v101
  %v331 = vpop.f32.mrf.mxu0
  %v332 = vadd.f32 0.0, %v331
  %v333 = vpop.f32.mrf.mxu0
  %v334 = vadd.f32 0.0, %v333
  %335 = vmatmul.bf16.gmra.mxu0 %v102
  %v336 = vpop.f32.mrf.mxu0
  %v337 = vadd.f32 0.0, %v336
  %v338 = vpop.f32.mrf.mxu0
  %v339 = vadd.f32 0.0, %v338
  %340 = vdwg.mxu0
  %v345 = vunpack.c.l.b16 %v19
  %v346 = vunpack.c.l.b16 %v20
  %v347 = vunpack.c.l.b16 %v21
  %v348 = vunpack.c.l.b16 %v22
  %v349 = vpack.c.b16 %v346, %v345
  %v350 = vpack.c.b16 %v348, %v347
  %v385 = vunpack.c.l.b16 %v23
  %v386 = vunpack.c.h.b16 %v23
  %v387 = vunpack.c.l.b16 %v24
  %v388 = vunpack.c.h.b16 %v24
  %v389 = vunpack.c.l.b16 %v25
  %v390 = vunpack.c.h.b16 %v25
  %v391 = vunpack.c.l.b16 %v26
  %v392 = vunpack.c.h.b16 %v26
  %v393 = vunpack.c.l.b16 %v27
  %v394 = vunpack.c.h.b16 %v27
  %v395 = vunpack.c.l.b16 %v28
  %v396 = vunpack.c.h.b16 %v28
  %v397 = vunpack.c.l.b16 %v29
  %v398 = vunpack.c.h.b16 %v29
  %v399 = vunpack.c.l.b16 %v30
  %v400 = vunpack.c.h.b16 %v30
  %v401 = vunpack.c.l.b16 %v31
  %v402 = vunpack.c.h.b16 %v31
  %v403 = vunpack.c.l.b16 %v32
  %v404 = vunpack.c.h.b16 %v32
  %v405 = vunpack.c.l.b16 %v33
  %v406 = vunpack.c.h.b16 %v33
  %v407 = vunpack.c.l.b16 %v34
  %v408 = vunpack.c.h.b16 %v34
  %v409 = vunpack.c.l.b16 %v35
  %v410 = vunpack.c.h.b16 %v35
  %v411 = vunpack.c.l.b16 %v36
  %v412 = vunpack.c.h.b16 %v36
  %v413 = vunpack.c.l.b16 %v37
  %v414 = vunpack.c.h.b16 %v37
  %v415 = vunpack.c.l.b16 %v38
  %v416 = vunpack.c.h.b16 %v38
  %v417 = vunpack.c.l.b16 %v39
  %v418 = vunpack.c.h.b16 %v39
  %v419 = vunpack.c.l.b16 %v40
  %v420 = vunpack.c.h.b16 %v40
  %v421 = vunpack.c.l.b16 %v41
  %v422 = vunpack.c.h.b16 %v41
  %v423 = vunpack.c.l.b16 %v42
  %v424 = vunpack.c.h.b16 %v42
  %v425 = vunpack.c.l.b16 %v43
  %v426 = vunpack.c.h.b16 %v43
  %v427 = vunpack.c.l.b16 %v44
  %v428 = vunpack.c.h.b16 %v44
  %v429 = vunpack.c.l.b16 %v45
  %v430 = vunpack.c.h.b16 %v45
  %v431 = vunpack.c.l.b16 %v46
  %v432 = vunpack.c.h.b16 %v46
  %v433 = vunpack.c.l.b16 %v47
  %v434 = vunpack.c.h.b16 %v47
  %v435 = vunpack.c.l.b16 %v48
  %v436 = vunpack.c.h.b16 %v48
  %v437 = vunpack.c.l.b16 %v49
  %v438 = vunpack.c.h.b16 %v49
  %v439 = vunpack.c.l.b16 %v50
  %v440 = vunpack.c.h.b16 %v50
  %v441 = vunpack.c.l.b16 %v51
  %v442 = vunpack.c.h.b16 %v51
  %v443 = vunpack.c.l.b16 %v52
  %v444 = vunpack.c.h.b16 %v52
  %v445 = vunpack.c.l.b16 %v53
  %v446 = vunpack.c.h.b16 %v53
  %v447 = vunpack.c.l.b16 %v54
  %v448 = vunpack.c.h.b16 %v54
  %v449 = vpack.c.b16 %v389, %v385
  %v450 = vpack.c.b16 %v390, %v386
  %v451 = vpack.c.b16 %v391, %v387
  %v452 = vpack.c.b16 %v392, %v388
  %v453 = vpack.c.b16 %v397, %v393
  %v454 = vpack.c.b16 %v398, %v394
  %v455 = vpack.c.b16 %v399, %v395
  %v456 = vpack.c.b16 %v400, %v396
  %v457 = vpack.c.b16 %v405, %v401
  %v458 = vpack.c.b16 %v406, %v402
  %v459 = vpack.c.b16 %v407, %v403
  %v460 = vpack.c.b16 %v408, %v404
  %v461 = vpack.c.b16 %v413, %v409
  %v462 = vpack.c.b16 %v414, %v410
  %v463 = vpack.c.b16 %v415, %v411
  %v464 = vpack.c.b16 %v416, %v412
  %v465 = vpack.c.b16 %v421, %v417
  %v466 = vpack.c.b16 %v422, %v418
  %v467 = vpack.c.b16 %v423, %v419
  %v468 = vpack.c.b16 %v424, %v420
  %v469 = vpack.c.b16 %v429, %v425
  %v470 = vpack.c.b16 %v430, %v426
  %v471 = vpack.c.b16 %v431, %v427
  %v472 = vpack.c.b16 %v432, %v428
  %v473 = vpack.c.b16 %v437, %v433
  %v474 = vpack.c.b16 %v438, %v434
  %v475 = vpack.c.b16 %v439, %v435
  %v476 = vpack.c.b16 %v440, %v436
  %v477 = vpack.c.b16 %v445, %v441
  %v478 = vpack.c.b16 %v446, %v442
  %v479 = vpack.c.b16 %v447, %v443
  %v480 = vpack.c.b16 %v448, %v444
  %513 = vmatpush.bf16.msra.mxu0 %v477
  %514 = vmatpush.bf16.msra.mxu0 %v473
  %515 = vmatpush.bf16.msra.mxu0 %v469
  %516 = vmatpush.bf16.msra.mxu0 %v465
  %517 = vmatpush.bf16.msra.mxu0 %v461
  %518 = vmatpush.bf16.msra.mxu0 %v457
  %519 = vmatpush.bf16.msra.mxu0 %v453
  %520 = vmatpush.bf16.msra.mxu0 %v449
  %521 = vmatmul.bf16.gmra.mxu0 %v349
  %v522 = vpop.f32.mrf.mxu0
  %v523 = vadd.f32 %v275, %v522
  %v524 = vpop.f32.mrf.mxu0
  %v525 = vadd.f32 %v277, %v524
  %526 = vmatmul.bf16.gmra.mxu0 %v350
  %v527 = vpop.f32.mrf.mxu0
  %v528 = vadd.f32 %v280, %v527
  %v529 = vpop.f32.mrf.mxu0
  %v530 = vadd.f32 %v282, %v529
  %531 = vdwg.mxu0
  %532 = vmatpush.bf16.msra.mxu0 %v478
  %533 = vmatpush.bf16.msra.mxu0 %v474
  %534 = vmatpush.bf16.msra.mxu0 %v470
  %535 = vmatpush.bf16.msra.mxu0 %v466
  %536 = vmatpush.bf16.msra.mxu0 %v462
  %537 = vmatpush.bf16.msra.mxu0 %v458
  %538 = vmatpush.bf16.msra.mxu0 %v454
  %539 = vmatpush.bf16.msra.mxu0 %v450
  %540 = vmatmul.bf16.gmra.mxu0 %v349
  %v541 = vpop.f32.mrf.mxu0
  %v542 = vadd.f32 %v294, %v541
  %v543 = vpop.f32.mrf.mxu0
  %v544 = vadd.f32 %v296, %v543
  %545 = vmatmul.bf16.gmra.mxu0 %v350
  %v546 = vpop.f32.mrf.mxu0
  %v547 = vadd.f32 %v299, %v546
  %v548 = vpop.f32.mrf.mxu0
  %v549 = vadd.f32 %v301, %v548
  %550 = vdwg.mxu0
  %551 = vmatpush.bf16.msra.mxu0 %v479
  %552 = vmatpush.bf16.msra.mxu0 %v475
  %553 = vmatpush.bf16.msra.mxu0 %v471
  %554 = vmatpush.bf16.msra.mxu0 %v467
  %555 = vmatpush.bf16.msra.mxu0 %v463
  %556 = vmatpush.bf16.msra.mxu0 %v459
  %557 = vmatpush.bf16.msra.mxu0 %v455
  %558 = vmatpush.bf16.msra.mxu0 %v451
  %559 = vmatmul.bf16.gmra.mxu0 %v349
  %v560 = vpop.f32.mrf.mxu0
  %v561 = vadd.f32 %v313, %v560
  %v562 = vpop.f32.mrf.mxu0
  %v563 = vadd.f32 %v315, %v562
  %564 = vmatmul.bf16.gmra.mxu0 %v350
  %v565 = vpop.f32.mrf.mxu0
  %v566 = vadd.f32 %v318, %v565
  %v567 = vpop.f32.mrf.mxu0
  %v568 = vadd.f32 %v320, %v567
  %569 = vdwg.mxu0
  %570 = vmatpush.bf16.msra.mxu0 %v480
  %571 = vmatpush.bf16.msra.mxu0 %v476
  %572 = vmatpush.bf16.msra.mxu0 %v472
  %573 = vmatpush.bf16.msra.mxu0 %v468
  %574 = vmatpush.bf16.msra.mxu0 %v464
  %575 = vmatpush.bf16.msra.mxu0 %v460
  %576 = vmatpush.bf16.msra.mxu0 %v456
  %577 = vmatpush.bf16.msra.mxu0 %v452
  %578 = vmatmul.bf16.gmra.mxu0 %v349
  %v579 = vpop.f32.mrf.mxu0
  %v580 = vadd.f32 %v332, %v579
  %v581 = vpop.f32.mrf.mxu0
  %v582 = vadd.f32 %v334, %v581
  %583 = vmatmul.bf16.gmra.mxu0 %v350
  %v584 = vpop.f32.mrf.mxu0
  %v585 = vadd.f32 %v337, %v584
  %v586 = vpop.f32.mrf.mxu0
  %v587 = vadd.f32 %v339, %v586
  %588 = vdwg.mxu0
  %s589 = scalar_lea.vmem %s0, 32
  %v590 = vld [vmem:[%s589] sm:$0xf]
  %v591 = vld [vmem:[%s589 + $0x4] sm:$0xf]
  %v592 = vld [vmem:[%s589 + $0x8] sm:$0xf]
  %v593 = vld [vmem:[%s589 + $0xc] sm:$0xf]
  %s594 = scalar_lea.vmem %s1, 512
  %v595 = vld [vmem:[%s594] sm:$0xff]
  %v596 = vld [vmem:[%s594 + $0x8] sm:$0xff]
  %v597 = vld [vmem:[%s594 + $0x10] sm:$0xff]
  %v598 = vld [vmem:[%s594 + $0x18] sm:$0xff]
  %v599 = vld [vmem:[%s594 + $0x20] sm:$0xff]
  %v600 = vld [vmem:[%s594 + $0x28] sm:$0xff]
  %v601 = vld [vmem:[%s594 + $0x30] sm:$0xff]
  %v602 = vld [vmem:[%s594 + $0x38] sm:$0xff]
  %v603 = vld [vmem:[%s594 + $0x40] sm:$0xff]
  %v604 = vld [vmem:[%s594 + $0x48] sm:$0xff]
  %v605 = vld [vmem:[%s594 + $0x50] sm:$0xff]
  %v606 = vld [vmem:[%s594 + $0x58] sm:$0xff]
  %v607 = vld [vmem:[%s594 + $0x60] sm:$0xff]
  %v608 = vld [vmem:[%s594 + $0x68] sm:$0xff]
  %v609 = vld [vmem:[%s594 + $0x70] sm:$0xff]
  %v610 = vld [vmem:[%s594 + $0x78] sm:$0xff]
  %v611 = vld [vmem:[%s594 + $0x80] sm:$0xff]
  %v612 = vld [vmem:[%s594 + $0x88] sm:$0xff]
  %v613 = vld [vmem:[%s594 + $0x90] sm:$0xff]
  %v614 = vld [vmem:[%s594 + $0x98] sm:$0xff]
  %v615 = vld [vmem:[%s594 + $0xa0] sm:$0xff]
  %v616 = vld [vmem:[%s594 + $0xa8] sm:$0xff]
  %v617 = vld [vmem:[%s594 + $0xb0] sm:$0xff]
  %v618 = vld [vmem:[%s594 + $0xb8] sm:$0xff]
  %v619 = vld [vmem:[%s594 + $0xc0] sm:$0xff]
  %v620 = vld [vmem:[%s594 + $0xc8] sm:$0xff]
  %v621 = vld [vmem:[%s594 + $0xd0] sm:$0xff]
  %v622 = vld [vmem:[%s594 + $0xd8] sm:$0xff]
  %v623 = vld [vmem:[%s594 + $0xe0] sm:$0xff]
  %v624 = vld [vmem:[%s594 + $0xe8] sm:$0xff]
  %v625 = vld [vmem:[%s594 + $0xf0] sm:$0xff]
  %v626 = vld [vmem:[%s594 + $0xf8] sm:$0xff]
  %v631 = vunpack.c.l.b16 %v590
  %v632 = vunpack.c.l.b16 %v591
  %v633 = vunpack.c.l.b16 %v592
  %v634 = vunpack.c.l.b16 %v593
  %v635 = vpack.c.b16 %v632, %v631
  %v636 = vpack.c.b16 %v634, %v633
  %v671 = vunpack.c.l.b16 %v595
  %v672 = vunpack.c.h.b16 %v595
  %v673 = vunpack.c.l.b16 %v596
  %v674 = vunpack.c.h.b16 %v596
  %v675 = vunpack.c.l.b16 %v597
  %v676 = vunpack.c.h.b16 %v597
  %v677 = vunpack.c.l.b16 %v598
  %v678 = vunpack.c.h.b16 %v598
  %v679 = vunpack.c.l.b16 %v599
  %v680 = vunpack.c.h.b16 %v599
  %v681 = vunpack.c.l.b16 %v600
  %v682 = vunpack.c.h.b16 %v600
  %v683 = vunpack.c.l.b16 %v601
  %v684 = vunpack.c.h.b16 %v601
  %v685 = vunpack.c.l.b16 %v602
  %v686 = vunpack.c.h.b16 %v602
  %v687 = vunpack.c.l.b16 %v603
  %v688 = vunpack.c.h.b16 %v603
  %v689 = vunpack.c.l.b16 %v604
  %v690 = vunpack.c.h.b16 %v604
  %v691 = vunpack.c.l.b16 %v605
  %v692 = vunpack.c.h.b16 %v605
  %v693 = vunpack.c.l.b16 %v606
  %v694 = vunpack.c.h.b16 %v606
  %v695 = vunpack.c.l.b16 %v607
  %v696 = vunpack.c.h.b16 %v607
  %v697 = vunpack.c.l.b16 %v608
  %v698 = vunpack.c.h.b16 %v608
  %v699 = vunpack.c.l.b16 %v609
  %v700 = vunpack.c.h.b16 %v609
  %v701 = vunpack.c.l.b16 %v610
  %v702 = vunpack.c.h.b16 %v610
  %v703 = vunpack.c.l.b16 %v611
  %v704 = vunpack.c.h.b16 %v611
  %v705 = vunpack.c.l.b16 %v612
  %v706 = vunpack.c.h.b16 %v612
  %v707 = vunpack.c.l.b16 %v613
  %v708 = vunpack.c.h.b16 %v613
  %v709 = vunpack.c.l.b16 %v614
  %v710 = vunpack.c.h.b16 %v614
  %v711 = vunpack.c.l.b16 %v615
  %v712 = vunpack.c.h.b16 %v615
  %v713 = vunpack.c.l.b16 %v616
  %v714 = vunpack.c.h.b16 %v616
  %v715 = vunpack.c.l.b16 %v617
  %v716 = vunpack.c.h.b16 %v617
  %v717 = vunpack.c.l.b16 %v618
  %v718 = vunpack.c.h.b16 %v618
  %v719 = vunpack.c.l.b16 %v619
  %v720 = vunpack.c.h.b16 %v619
  %v721 = vunpack.c.l.b16 %v620
  %v722 = vunpack.c.h.b16 %v620
  %v723 = vunpack.c.l.b16 %v621
  %v724 = vunpack.c.h.b16 %v621
  %v725 = vunpack.c.l.b16 %v622
  %v726 = vunpack.c.h.b16 %v622
  %v727 = vunpack.c.l.b16 %v623
  %v728 = vunpack.c.h.b16 %v623
  %v729 = vunpack.c.l.b16 %v624
  %v730 = vunpack.c.h.b16 %v624
  %v731 = vunpack.c.l.b16 %v625
  %v732 = vunpack.c.h.b16 %v625
  %v733 = vunpack.c.l.b16 %v626
  %v734 = vunpack.c.h.b16 %v626
  %v735 = vpack.c.b16 %v675, %v671
  %v736 = vpack.c.b16 %v676, %v672
  %v737 = vpack.c.b16 %v677, %v673
  %v738 = vpack.c.b16 %v678, %v674
  %v739 = vpack.c.b16 %v683, %v679
  %v740 = vpack.c.b16 %v684, %v680
  %v741 = vpack.c.b16 %v685, %v681
  %v742 = vpack.c.b16 %v686, %v682
  %v743 = vpack.c.b16 %v691, %v687
  %v744 = vpack.c.b16 %v692, %v688
  %v745 = vpack.c.b16 %v693, %v689
  %v746 = vpack.c.b16 %v694, %v690
  %v747 = vpack.c.b16 %v699, %v695
  %v748 = vpack.c.b16 %v700, %v696
  %v749 = vpack.c.b16 %v701, %v697
  %v750 = vpack.c.b16 %v702, %v698
  %v751 = vpack.c.b16 %v707, %v703
  %v752 = vpack.c.b16 %v708, %v704
  %v753 = vpack.c.b16 %v709, %v705
  %v754 = vpack.c.b16 %v710, %v706
  %v755 = vpack.c.b16 %v715, %v711
  %v756 = vpack.c.b16 %v716, %v712
  %v757 = vpack.c.b16 %v717, %v713
  %v758 = vpack.c.b16 %v718, %v714
  %v759 = vpack.c.b16 %v723, %v719
  %v760 = vpack.c.b16 %v724, %v720
  %v761 = vpack.c.b16 %v725, %v721
  %v762 = vpack.c.b16 %v726, %v722
  %v763 = vpack.c.b16 %v731, %v727
  %v764 = vpack.c.b16 %v732, %v728
  %v765 = vpack.c.b16 %v733, %v729
  %v766 = vpack.c.b16 %v734, %v730
  %799 = vmatpush.bf16.msra.mxu0 %v763
  %800 = vmatpush.bf16.msra.mxu0 %v759
  %801 = vmatpush.bf16.msra.mxu0 %v755
  %802 = vmatpush.bf16.msra.mxu0 %v751
  %803 = vmatpush.bf16.msra.mxu0 %v747
  %804 = vmatpush.bf16.msra.mxu0 %v743
  %805 = vmatpush.bf16.msra.mxu0 %v739
  %806 = vmatpush.bf16.msra.mxu0 %v735
  %807 = vmatmul.bf16.gmra.mxu0 %v635
  %v808 = vpop.f32.mrf.mxu0
  %v809 = vadd.f32 0.0, %v808
  %v810 = vpop.f32.mrf.mxu0
  %v811 = vadd.f32 0.0, %v810
  %812 = vmatmul.bf16.gmra.mxu0 %v636
  %v813 = vpop.f32.mrf.mxu0
  %v814 = vadd.f32 0.0, %v813
  %v815 = vpop.f32.mrf.mxu0
  %v816 = vadd.f32 0.0, %v815
  %817 = vdwg.mxu0
  %818 = vmatpush.bf16.msra.mxu0 %v764
  %819 = vmatpush.bf16.msra.mxu0 %v760
  %820 = vmatpush.bf16.msra.mxu0 %v756
  %821 = vmatpush.bf16.msra.mxu0 %v752
  %822 = vmatpush.bf16.msra.mxu0 %v748
  %823 = vmatpush.bf16.msra.mxu0 %v744
  %824 = vmatpush.bf16.msra.mxu0 %v740
  %825 = vmatpush.bf16.msra.mxu0 %v736
  %826 = vmatmul.bf16.gmra.mxu0 %v635
  %v827 = vpop.f32.mrf.mxu0
  %v828 = vadd.f32 0.0, %v827
  %v829 = vpop.f32.mrf.mxu0
  %v830 = vadd.f32 0.0, %v829
  %831 = vmatmul.bf16.gmra.mxu0 %v636
  %v832 = vpop.f32.mrf.mxu0
  %v833 = vadd.f32 0.0, %v832
  %v834 = vpop.f32.mrf.mxu0
  %v835 = vadd.f32 0.0, %v834
  %836 = vdwg.mxu0
  %837 = vmatpush.bf16.msra.mxu0 %v765
  %838 = vmatpush.bf16.msra.mxu0 %v761
  %839 = vmatpush.bf16.msra.mxu0 %v757
  %840 = vmatpush.bf16.msra.mxu0 %v753
  %841 = vmatpush.bf16.msra.mxu0 %v749
  %842 = vmatpush.bf16.msra.mxu0 %v745
  %843 = vmatpush.bf16.msra.mxu0 %v741
  %844 = vmatpush.bf16.msra.mxu0 %v737
  %845 = vmatmul.bf16.gmra.mxu0 %v635
  %v846 = vpop.f32.mrf.mxu0
  %v847 = vadd.f32 0.0, %v846
  %v848 = vpop.f32.mrf.mxu0
  %v849 = vadd.f32 0.0, %v848
  %850 = vmatmul.bf16.gmra.mxu0 %v636
  %v851 = vpop.f32.mrf.mxu0
  %v852 = vadd.f32 0.0, %v851
  %v853 = vpop.f32.mrf.mxu0
  %v854 = vadd.f32 0.0, %v853
  %855 = vdwg.mxu0
  %856 = vmatpush.bf16.msra.mxu0 %v766
  %857 = vmatpush.bf16.msra.mxu0 %v762
  %858 = vmatpush.bf16.msra.mxu0 %v758
  %859 = vmatpush.bf16.msra.mxu0 %v754
  %860 = vmatpush.bf16.msra.mxu0 %v750
  %861 = vmatpush.bf16.msra.mxu0 %v746
  %862 = vmatpush.bf16.msra.mxu0 %v742
  %863 = vmatpush.bf16.msra.mxu0 %v738
  %864 = vmatmul.bf16.gmra.mxu0 %v635
  %v865 = vpop.f32.mrf.mxu0
  %v866 = vadd.f32 0.0, %v865
  %v867 = vpop.f32.mrf.mxu0
  %v868 = vadd.f32 0.0, %v867
  %869 = vmatmul.bf16.gmra.mxu0 %v636
  %v870 = vpop.f32.mrf.mxu0
  %v871 = vadd.f32 0.0, %v870
  %v872 = vpop.f32.mrf.mxu0
  %v873 = vadd.f32 0.0, %v872
  %874 = vdwg.mxu0
  %v875 = vadd.f32 %v523, %v809
  %v876 = vadd.f32 %v542, %v828
  %v877 = vadd.f32 %v561, %v847
  %v878 = vadd.f32 %v580, %v866
  %v879 = vadd.f32 %v525, %v811
  %v880 = vadd.f32 %v544, %v830
  %v881 = vadd.f32 %v563, %v849
  %v882 = vadd.f32 %v582, %v868
  %v883 = vadd.f32 %v528, %v814
  %v884 = vadd.f32 %v547, %v833
  %v885 = vadd.f32 %v566, %v852
  %v886 = vadd.f32 %v585, %v871
  %v887 = vadd.f32 %v530, %v816
  %v888 = vadd.f32 %v549, %v835
  %v889 = vadd.f32 %v568, %v854
  %v890 = vadd.f32 %v587, %v873
  %v891 = vadd.f32 %v875, %v879
  %v892 = vrot.slane %v891, 4
  %v893 = vadd.f32 %v891, %v892
  %v894 = vrot.slane %v893, 2
  %v895 = vadd.f32 %v893, %v894
  %v896 = vrot.slane %v895, 1
  %v897 = vadd.f32 %v895, %v896
  %v898 = vadd.f32 %v876, %v880
  %v899 = vrot.slane %v898, 4
  %v900 = vadd.f32 %v898, %v899
  %v901 = vrot.slane %v900, 2
  %v902 = vadd.f32 %v900, %v901
  %v903 = vrot.slane %v902, 1
  %v904 = vadd.f32 %v902, %v903
  %v905 = vadd.f32 %v877, %v881
  %v906 = vrot.slane %v905, 4
  %v907 = vadd.f32 %v905, %v906
  %v908 = vrot.slane %v907, 2
  %v909 = vadd.f32 %v907, %v908
  %v910 = vrot.slane %v909, 1
  %v911 = vadd.f32 %v909, %v910
  %v912 = vadd.f32 %v878, %v882
  %v913 = vrot.slane %v912, 4
  %v914 = vadd.f32 %v912, %v913
  %v915 = vrot.slane %v914, 2
  %v916 = vadd.f32 %v914, %v915
  %v917 = vrot.slane %v916, 1
  %v918 = vadd.f32 %v916, %v917
  %v919 = vadd.f32 %v883, %v887
  %v920 = vrot.slane %v919, 4
  %v921 = vadd.f32 %v919, %v920
  %v922 = vrot.slane %v921, 2
  %v923 = vadd.f32 %v921, %v922
  %v924 = vrot.slane %v923, 1
  %v925 = vadd.f32 %v923, %v924
  %v926 = vadd.f32 %v884, %v888
  %v927 = vrot.slane %v926, 4
  %v928 = vadd.f32 %v926, %v927
  %v929 = vrot.slane %v928, 2
  %v930 = vadd.f32 %v928, %v929
  %v931 = vrot.slane %v930, 1
  %v932 = vadd.f32 %v930, %v931
  %v933 = vadd.f32 %v885, %v889
  %v934 = vrot.slane %v933, 4
  %v935 = vadd.f32 %v933, %v934
  %v936 = vrot.slane %v935, 2
  %v937 = vadd.f32 %v935, %v936
  %v938 = vrot.slane %v937, 1
  %v939 = vadd.f32 %v937, %v938
  %v940 = vadd.f32 %v886, %v890
  %v941 = vrot.slane %v940, 4
  %v942 = vadd.f32 %v940, %v941
  %v943 = vrot.slane %v942, 2
  %v944 = vadd.f32 %v942, %v943
  %v945 = vrot.slane %v944, 1
  %v946 = vadd.f32 %v944, %v945
  %v947 = vld [vmem:[%s2] sm:$0xf]
  %v949 = vperm.slane %v947, 0
  %v950 = vperm.slane %v947, 1
  %v951 = vperm.slane %v947, 2
  %v952 = vperm.slane %v947, 3
  %v957 = vmul.f32 %v897, %v949
  %v958 = vmul.f32 %v904, %v950
  %v959 = vmul.f32 %v911, %v951
  %v960 = vmul.f32 %v918, %v952
  %v961 = vmul.f32 %v925, %v949
  %v962 = vmul.f32 %v932, %v950
  %v963 = vmul.f32 %v939, %v951
  %v964 = vmul.f32 %v946, %v952
  %v973 = vrot.slane %v961, 7
  %vm974 = vcmask 1041409
  %v975 = vsel %vm974, %v973, %v957
  %v976 = vrot.slane %v962, 7
  %v977 = vsel %vm974, %v976, %v958
  %v978 = vrot.slane %v963, 7
  %v979 = vsel %vm974, %v978, %v959
  %v980 = vrot.slane %v964, 7
  %v981 = vsel %vm974, %v980, %v960
  %vm986 = vcmask 1041408
  %v987 = vsel %vm986, %v975, 0.0
  %v988 = vsel %vm986, %v977, 0.0
  %v989 = vadd.f32 %v987, %v988
  %v990 = vsel %vm986, %v979, 0.0
  %v991 = vadd.f32 %v989, %v990
  %v992 = vsel %vm986, %v981, 0.0
  %v993 = vadd.f32 %v991, %v992
  %994 = vadd.xlane.f32.xlu0 %v993
  %v995 = vpop.xlane.xlu0 %994
  %v996 = vmul.f32 %v995, 0.00390625
  %v997 = vld [vmem:[#allocation2] sm:$0x1]
  %v999 = vperm.slane %v997, 0
  %v1001 = vadd.f32 %v996, %v999
  %vm1002 = vcmask 1024
  %1003 = vst.msk [vmem:[%s4] sm:$0x3] %vm1002, %v1001
  // Predicated region
  $region18: #{model_forward.1} parent=0 // pred_check
    _
  $region19: #{model_forward.1} parent=0 // pred_check_branch
    %1005 = sbr.rel (0) target = $region21
  $region20: #{model_forward.1} parent=0 // pred_region
    _
  $region21: #{model_forward.1} parent=0 // pred_fallthru
    _
  // Predicated region
  $region22: #{model_forward.1} parent=0 // pred_check
    _
  $region23: #{model_forward.1} parent=0 // pred_check_branch
    %1007 = sbr.rel (0) target = $region25
  $region24: #{model_forward.1} parent=0 // pred_region
    _
  $region25: #{model_forward.1} parent=0 // pred_fallthru
    _

</llo_original>
